<compile_context>
chip_gen: v7x
topology: tpu7x:2x2x1
jax: 0.10.0
libtpu: 0.0.40
codegen_flags: <defaults>
</compile_context>

<pallas_src>
import numpy as np
import jax
import jax.numpy as jnp
from jax.experimental import pallas as pl
from jax.experimental.pallas import tpu as pltpu

# ----------------------------- configuration --------------------------------
N_USERS = 16
N_ITEMS = 24            # number of news
N_ENTITIES = 32
N_RELATIONS = 5
N_FACTORS = 4
EMB_DIM = 100           # module's embedding_dim (Aggregator hard-codes 100)
D_PAD = 128             # lane-dense padded embedding dim used inside kernels
R_PAD = 8               # relation-table rows padded 5 -> 8 (sublane aligned)
K_NEWS = 8              # entities per news
K_ENT = 20              # neighbors per entity (hard-coded 20 in the module)
CONTEXT_HOPS = 2
DECAY = 1e-5            # args.l2
SIM_DECAY = 1e-4        # args.sim_regularity
BATCH = 2
N_CAND = 5
N_NODES = N_ITEMS + N_ENTITIES   # 56 (multiple of 8 -> sublane aligned)


# ------------------------------ Pallas kernel --------------------------------
def _gcn_hop_kernel(agg_ref, rel_ref, news_ref, ent_ref, relation_ref,
                    user_ref, latent_ref, inter_ref, disen_ref,
                    node_res_ref, user_res_ref, all_scr):
    # assemble all_embedding = cat([news_emb, entity_emb]) directly in VMEM
    all_scr[0:N_ITEMS, :] = news_ref[...]
    all_scr[N_ITEMS:N_NODES, :] = ent_ref[...]
    all_emb = all_scr[...]                                            # (56,128)

    # node_emb = (A + B) @ all_emb + R @ relation_emb
    #   A: mean neighbor aggregation (news: entity table rows; entities: the
    #      REBOUND all_embedding[:N_ENTITIES] rows, faithful to the reference)
    #   B: residual base (news_emb[j] / all_emb[i])
    #   R: mean relation aggregation
    node_emb = (jnp.dot(agg_ref[...], all_emb,
                        preferred_element_type=jnp.float32)
                + jnp.dot(rel_ref[...], relation_ref[...],
                          preferred_element_type=jnp.float32))        # (56,128)

    # score = softmax(user_emb @ latent_emb.T, dim=1); contract on the last
    # dims of both so the transpose folds into the MXU (no XLU vxpose).
    u = user_ref[...]                                                 # (16,128)
    score_ = jax.lax.dot_general(u, latent_ref[...],
                                 dimension_numbers=(((1,), (1,)), ((), ())),
                                 preferred_element_type=jnp.float32)  # (16,4)
    score_ = score_ - jnp.max(score_, axis=1, keepdims=True)
    e = jnp.exp(score_)
    score = e / jnp.sum(e, axis=1, keepdims=True)

    # user_agg = interact_mat @ node_emb  — single fused matmul (K = 56)
    user_agg = jnp.dot(inter_ref[...], node_emb,
                       preferred_element_type=jnp.float32)            # (16,128)

    # (disen_weight * score).sum(dim=1) == score @ disen  (disen precomputed);
    # epilogue folded: user_agg * mix + user_agg == user_agg * (mix + 1)
    mix = jnp.dot(score, disen_ref[...], preferred_element_type=jnp.float32)
    user_out = user_agg * (mix + 1.0)

    # fused F.normalize + CONTEXT_HOPS scaling + residual add.  Every hop of
    # the reference GraphConv receives the ORIGINAL embeddings, so all hops
    # are identical and the normalized contribution is added n_hops times.
    def _l2n(x):
        n = jnp.sqrt(jnp.sum(x * x, axis=1, keepdims=True))
        return x / jnp.maximum(n, 1e-12)

    node_res_ref[...] = all_emb + float(CONTEXT_HOPS) * _l2n(node_emb)
    user_res_ref[...] = u + float(CONTEXT_HOPS) * _l2n(user_out)


def gcn_hop(agg, rel, news_p, ent_p, relation_p, user_p, latent_p, inter, disen):
    """Fused GCN forward: returns (node_res, user_res), already normalized,
    scaled by CONTEXT_HOPS and residual-added."""
    in_elems = (agg.size + rel.size + news_p.size + ent_p.size + relation_p.size
                + user_p.size + latent_p.size + inter.size + disen.size)
    out_elems = N_NODES * D_PAD + N_USERS * D_PAD
    flops = 2 * (N_NODES * N_NODES * D_PAD          # (A+B) @ all_emb
                 + N_NODES * R_PAD * D_PAD          # R @ relation
                 + N_USERS * N_FACTORS * D_PAD      # score matmul
                 + N_USERS * N_NODES * D_PAD        # user aggregation
                 + N_USERS * N_FACTORS * D_PAD)     # mix matmul
    transcendentals = N_USERS * N_FACTORS + N_NODES + N_USERS   # exp + sqrt

    return pl.pallas_call(
        _gcn_hop_kernel,
        out_shape=(jax.ShapeDtypeStruct((N_NODES, D_PAD), jnp.float32),
                   jax.ShapeDtypeStruct((N_USERS, D_PAD), jnp.float32)),
        scratch_shapes=[pltpu.VMEM((N_NODES, D_PAD), jnp.float32)],
        compiler_params=pltpu.CompilerParams(vmem_limit_bytes=32 * 1024 * 1024),
        cost_estimate=pl.CostEstimate(flops=flops,
                                      transcendentals=transcendentals,
                                      bytes_accessed=4 * (in_elems + out_elems)),
    )(agg, rel, news_p, ent_p, relation_p, user_p, latent_p, inter, disen)


# ------------------------------ JAX glue -------------------------------------
def cul_cor_cosine(disen_weight_att):
    # GraphConv._cul_cor with ind == 'cosine'
    cor = 0.0
    for i in range(N_FACTORS):
        for j in range(i + 1, N_FACTORS):
            t1 = disen_weight_att[i]
            t2 = disen_weight_att[j]
            n1 = t1 / jnp.linalg.norm(t1)
            n2 = t2 / jnp.linalg.norm(t2)
            cor = cor + jnp.sum(n1 * n2) ** 2
    return cor


def gcn_forward(pp, static):
    """pp: pre-padded params.  static: precomputed adjacency / interact mats."""
    cor = cul_cor_cosine(pp["disen_weight_att"])
    # tiny 4x4 @ 4x128 hoisted out of the kernel
    disen = jnp.dot(jax.nn.softmax(pp["disen_weight_att"], axis=-1),
                    pp["weight"])                                     # (4,128)
    node_res, user_res = gcn_hop(
        static["agg"], static["rel"],
        pp["news_emb"], pp["entity_emb"], pp["relation_emb"],
        pp["user_emb"], pp["latent_emb"], static["inter"], disen)
    return user_res, node_res, cor


def kgin_forward(pp, static, user_index, candidate_newsindex, labels):
    # user_index.unsqueeze(1).repeat(1,5) -> flatten; candidate flatten
    user_idx = jnp.repeat(user_index[:, None], N_CAND, axis=1).reshape(-1)
    cand_idx = candidate_newsindex.reshape(-1)

    user_gcn, all_gcn, cor = gcn_forward(pp, static)

    # slice the padded (all-zero) columns back off before the final products
    u_e = user_gcn[user_idx, :EMB_DIM]
    i_e = all_gcn[cand_idx, :EMB_DIM]

    # create_bpr_loss (reference applies F.cross_entropy on SOFTMAXED scores —
    # faithful to the original module, intentionally kept)
    scores = jnp.sum(i_e * u_e, axis=1)
    scores5 = scores.reshape(-1, N_CAND)
    probs = jax.nn.softmax(scores5, axis=-1)
    logp = jax.nn.log_softmax(probs, axis=-1)
    target = jnp.argmax(labels, axis=1)
    rec_loss = -jnp.mean(jnp.take_along_axis(logp, target[:, None], axis=1))
    regularizer = (jnp.sum(u_e ** 2) + jnp.sum(i_e ** 2)) / 2.0
    emb_loss = DECAY * regularizer / u_e.shape[0]
    cor_loss = SIM_DECAY * cor
    total = rec_loss + emb_loss + cor_loss
    return total, scores5, rec_loss, emb_loss


# --------------------------- deterministic setup ------------------------------
def xavier_uniform(key, shape):
    fan_in, fan_out = shape[1], shape[0]
    a = np.sqrt(6.0 / (fan_in + fan_out))
    return jax.random.uniform(key, shape, jnp.float32, -a, a)


def pad_last(x, d=D_PAD):
    return jnp.pad(x, [(0, 0)] * (x.ndim - 1) + [(0, d - x.shape[-1])])


def pad_params(params):
    """One-time (outside the jitted step) zero-padding of the embedding dim to
    128; padded columns stay exactly zero through every downstream op."""
    pp = dict(params)
    for k in ("user_emb", "news_emb", "entity_emb", "latent_emb", "weight"):
        pp[k] = pad_last(params[k])
    pp["relation_emb"] = jnp.pad(params["relation_emb"],
                                 [(0, R_PAD - N_RELATIONS),
                                  (0, D_PAD - EMB_DIM)])
    return pp


def build_static_structures():
    """Synthetic deterministic graph dicts + dense mean-aggregation matrices."""
    news_entity_dict = {j: [(j * 3 + k) % N_ENTITIES for k in range(K_NEWS)]
                        for j in range(N_ITEMS)}
    entity_adj, relation_adj = {}, {}
    for i in range(0, N_ENTITIES, 2):                  # odd entities hit fallback
        entity_adj[i] = [(i * 5 + k) % N_ENTITIES for k in range(K_ENT)]
        relation_adj[i] = [(i + k) % N_RELATIONS for k in range(K_ENT)]
    user_click_dict = {u: [(u * 7 + k) % N_ITEMS for k in range(3)]
                       for u in range(N_USERS)}

    # (A + B): dense mean-aggregation + residual-base matrix over all_emb rows.
    agg = np.zeros((N_NODES, N_NODES), np.float32)
    rel = np.zeros((N_NODES, R_PAD), np.float32)

    # news rows: mean over entity_emb[news_entities] (= all_emb rows 24+e),
    # relations all index 0; residual base = news_emb[j] = all_emb[j].
    for j in range(N_ITEMS):
        agg[j, j] += 1.0
        for e in news_entity_dict[j]:
            agg[j, N_ITEMS + e] += 1.0 / K_NEWS
        rel[j, 0] += 1.0                               # K_NEWS * (1/K_NEWS)

    # entity rows: reference REBINDS entity_emb = all_embedding[:N_ENTITIES]
    # before the neighbor gather, so neighbor columns index all_emb[0..31];
    # residual base = all_emb[i].  Fallback rows use 20 zeros.
    for i in range(N_ENTITIES):
        r = N_ITEMS + i
        agg[r, i] += 1.0
        ne = entity_adj.get(i, [0] * K_ENT)
        nr = relation_adj.get(i, [0] * K_ENT)
        for n in ne:
            agg[r, n] += 1.0 / K_ENT
        for rr in nr:
            rel[r, rr] += 1.0 / K_ENT

    # KGIN_model._convert_sp_mat_to_sp_tensor -> dense (duplicates sum, as in
    # sparse mm)
    inter = np.zeros((N_USERS, N_NODES), np.float32)
    for u in range(N_USERS):
        for j in user_click_dict[u]:
            if j != N_ITEMS - 1:
                inter[u, j] += 1.0
                for m in news_entity_dict[j]:
                    if m != 0:
                        inter[u, m + N_ITEMS] += 1.0

    return dict(agg=jnp.asarray(agg), rel=jnp.asarray(rel),
                inter=jnp.asarray(inter))


if __name__ == "__main__":
    key = jax.random.PRNGKey(0)
    ks = jax.random.split(key, 10)
    params = dict(
        user_emb=xavier_uniform(ks[0], (N_USERS, EMB_DIM)),
        news_emb=xavier_uniform(ks[1], (N_ITEMS, EMB_DIM)),
        entity_emb=xavier_uniform(ks[2], (N_ENTITIES, EMB_DIM)),
        relation_emb=xavier_uniform(ks[3], (N_RELATIONS, EMB_DIM)),
        latent_emb=xavier_uniform(ks[4], (N_FACTORS, EMB_DIM)),
        weight=xavier_uniform(ks[5], (N_RELATIONS - 1, EMB_DIM)),
        disen_weight_att=xavier_uniform(ks[6], (N_FACTORS, N_RELATIONS - 1)),
    )
    static = build_static_structures()        # precomputed adjacency matrices
    pp = pad_params(params)                   # pad once, outside the step

    user_index = jax.random.randint(ks[7], (BATCH,), 0, N_USERS, jnp.int32)
    candidate_newsindex = jax.random.randint(ks[8], (BATCH, N_CAND), 0, N_ITEMS,
                                             jnp.int32)
    labels = jax.nn.one_hot(
        jax.random.randint(ks[9], (BATCH,), 0, N_CAND), N_CAND,
        dtype=jnp.float32)

    fwd = jax.jit(kgin_forward)
    total, scores5, rec_loss, emb_loss = fwd(
        pp, static, user_index, candidate_newsindex, labels)
    jax.block_until_ready((total, scores5, rec_loss, emb_loss))

    assert scores5.shape == (BATCH, N_CAND)
    assert jnp.isfinite(total) and jnp.isfinite(rec_loss) and jnp.isfinite(emb_loss)
    assert bool(jnp.all(jnp.isfinite(scores5)))
    print("KERNEL_OK")
</pallas_src>

<mosaic_0001>
module attributes {stable_mosaic.version = 11 : i64} {
  func.func @_gcn_hop_kernel(%arg0: memref<56x56xf32, #tpu.memory_space<vmem>>, %arg1: memref<56x8xf32, #tpu.memory_space<vmem>>, %arg2: memref<24x128xf32, #tpu.memory_space<vmem>>, %arg3: memref<32x128xf32, #tpu.memory_space<vmem>>, %arg4: memref<8x128xf32, #tpu.memory_space<vmem>>, %arg5: memref<16x128xf32, #tpu.memory_space<vmem>>, %arg6: memref<4x128xf32, #tpu.memory_space<vmem>>, %arg7: memref<16x56xf32, #tpu.memory_space<vmem>>, %arg8: memref<4x128xf32, #tpu.memory_space<vmem>>, %arg9: memref<56x128xf32, #tpu.memory_space<vmem>>, %arg10: memref<16x128xf32, #tpu.memory_space<vmem>>, %arg11: memref<56x128xf32, #tpu.memory_space<vmem>>) attributes {dimension_semantics = [], scalar_prefetch = 0 : i64, scratch_operands = 1 : i64, tpu.core_type = #tpu.core_type<tc>} {
    %c0 = arith.constant 0 : index
    %c0_0 = arith.constant 0 : index
    %0 = vector.load %arg2[%c0, %c0_0] : memref<24x128xf32, #tpu.memory_space<vmem>>, vector<24x128xf32>
    %c0_1 = arith.constant 0 : index
    %c0_2 = arith.constant 0 : index
    %1 = vector.load %arg11[%c0_1, %c0_2] : memref<56x128xf32, #tpu.memory_space<vmem>>, vector<24x128xf32>
    tpu.vector_store %arg11[%c0_1, %c0_2], %0 {strides = array<i32>} : memref<56x128xf32, #tpu.memory_space<vmem>>, vector<24x128xf32>,
    %c0_3 = arith.constant 0 : index
    %c0_4 = arith.constant 0 : index
    %2 = vector.load %arg3[%c0_3, %c0_4] : memref<32x128xf32, #tpu.memory_space<vmem>>, vector<32x128xf32>
    %c24 = arith.constant 24 : index
    %c0_5 = arith.constant 0 : index
    %3 = vector.load %arg11[%c24, %c0_5] : memref<56x128xf32, #tpu.memory_space<vmem>>, vector<32x128xf32>
    tpu.vector_store %arg11[%c24, %c0_5], %2 {strides = array<i32>} : memref<56x128xf32, #tpu.memory_space<vmem>>, vector<32x128xf32>,
    %c0_6 = arith.constant 0 : index
    %c0_7 = arith.constant 0 : index
    %4 = vector.load %arg11[%c0_6, %c0_7] : memref<56x128xf32, #tpu.memory_space<vmem>>, vector<56x128xf32>
    %c0_8 = arith.constant 0 : index
    %c0_9 = arith.constant 0 : index
    %5 = vector.load %arg0[%c0_8, %c0_9] : memref<56x56xf32, #tpu.memory_space<vmem>>, vector<56x56xf32>
    %cst = arith.constant dense<0.000000e+00> : vector<56x128xf32>
    %6 = tpu.matmul %5, %4, %cst {dimension_numbers = #tpu.dot_dimension_numbers<[1], [0], [0], [1], [0, 0, 1, 1], [], []>} : vector<56x56xf32>, vector<56x128xf32>, vector<56x128xf32> -> vector<56x128xf32>
    %c0_10 = arith.constant 0 : index
    %c0_11 = arith.constant 0 : index
    %7 = vector.load %arg1[%c0_10, %c0_11] : memref<56x8xf32, #tpu.memory_space<vmem>>, vector<56x8xf32>
    %c0_12 = arith.constant 0 : index
    %c0_13 = arith.constant 0 : index
    %8 = vector.load %arg4[%c0_12, %c0_13] : memref<8x128xf32, #tpu.memory_space<vmem>>, vector<8x128xf32>
    %cst_14 = arith.constant dense<0.000000e+00> : vector<56x128xf32>
    %9 = tpu.matmul %7, %8, %cst_14 {dimension_numbers = #tpu.dot_dimension_numbers<[1], [0], [0], [1], [0, 0, 1, 1], [], []>} : vector<56x8xf32>, vector<8x128xf32>, vector<56x128xf32> -> vector<56x128xf32>
    %10 = arith.addf %6, %9 : vector<56x128xf32>
    %c0_15 = arith.constant 0 : index
    %c0_16 = arith.constant 0 : index
    %11 = vector.load %arg5[%c0_15, %c0_16] : memref<16x128xf32, #tpu.memory_space<vmem>>, vector<16x128xf32>
    %c0_17 = arith.constant 0 : index
    %c0_18 = arith.constant 0 : index
    %12 = vector.load %arg6[%c0_17, %c0_18] : memref<4x128xf32, #tpu.memory_space<vmem>>, vector<4x128xf32>
    %cst_19 = arith.constant dense<0.000000e+00> : vector<16x4xf32>
    %13 = tpu.matmul %11, %12, %cst_19 {dimension_numbers = #tpu.dot_dimension_numbers<[1], [1], [0], [0], [0, 0, 1, 0], [], []>} : vector<16x128xf32>, vector<4x128xf32>, vector<16x4xf32> -> vector<16x4xf32>
    %cst_20 = arith.constant dense<0xFF800000> : vector<16xf32>
    %14 = vector.multi_reduction <maximumf>, %13, %cst_20 [1] : vector<16x4xf32> to vector<16xf32>
    %15 = vector.shape_cast %14 : vector<16xf32> to vector<16x1xf32>
    %16 = vector.broadcast %15 : vector<16x1xf32> to vector<16x4xf32>
    %17 = arith.subf %13, %16 : vector<16x4xf32>
    %18 = math.exp %17 : vector<16x4xf32>
    %cst_21 = arith.constant dense<0.000000e+00> : vector<16xf32>
    %19 = vector.multi_reduction <add>, %18, %cst_21 [1] : vector<16x4xf32> to vector<16xf32>
    %20 = vector.shape_cast %19 : vector<16xf32> to vector<16x1xf32>
    %21 = vector.broadcast %20 : vector<16x1xf32> to vector<16x4xf32>
    %22 = arith.divf %18, %21 : vector<16x4xf32>
    %c0_22 = arith.constant 0 : index
    %c0_23 = arith.constant 0 : index
    %23 = vector.load %arg7[%c0_22, %c0_23] : memref<16x56xf32, #tpu.memory_space<vmem>>, vector<16x56xf32>
    %cst_24 = arith.constant dense<0.000000e+00> : vector<16x128xf32>
    %24 = tpu.matmul %23, %10, %cst_24 {dimension_numbers = #tpu.dot_dimension_numbers<[1], [0], [0], [1], [0, 0, 1, 1], [], []>} : vector<16x56xf32>, vector<56x128xf32>, vector<16x128xf32> -> vector<16x128xf32>
    %c0_25 = arith.constant 0 : index
    %c0_26 = arith.constant 0 : index
    %25 = vector.load %arg8[%c0_25, %c0_26] : memref<4x128xf32, #tpu.memory_space<vmem>>, vector<4x128xf32>
    %cst_27 = arith.constant dense<0.000000e+00> : vector<16x128xf32>
    %26 = tpu.matmul %22, %25, %cst_27 {dimension_numbers = #tpu.dot_dimension_numbers<[1], [0], [0], [1], [0, 0, 1, 1], [], []>} : vector<16x4xf32>, vector<4x128xf32>, vector<16x128xf32> -> vector<16x128xf32>
    %cst_28 = arith.constant 1.000000e+00 : f32
    %27 = vector.broadcast %cst_28 : f32 to vector<16x128xf32>
    %28 = arith.addf %26, %27 : vector<16x128xf32>
    %29 = arith.mulf %24, %28 : vector<16x128xf32>
    %30 = arith.mulf %10, %10 : vector<56x128xf32>
    %cst_29 = arith.constant dense<0.000000e+00> : vector<56xf32>
    %31 = vector.multi_reduction <add>, %30, %cst_29 [1] : vector<56x128xf32> to vector<56xf32>
    %32 = vector.shape_cast %31 : vector<56xf32> to vector<56x1xf32>
    %33 = math.sqrt %32 : vector<56x1xf32>
    %cst_30 = arith.constant 9.99999996E-13 : f32
    %34 = vector.broadcast %cst_30 : f32 to vector<56x1xf32>
    %35 = arith.maximumf %33, %34 : vector<56x1xf32>
    %36 = vector.broadcast %35 : vector<56x1xf32> to vector<56x128xf32>
    %37 = arith.divf %10, %36 : vector<56x128xf32>
    %cst_31 = arith.constant 2.000000e+00 : f32
    %38 = vector.broadcast %cst_31 : f32 to vector<56x128xf32>
    %39 = arith.mulf %38, %37 : vector<56x128xf32>
    %40 = arith.addf %4, %39 : vector<56x128xf32>
    %c0_32 = arith.constant 0 : index
    %c0_33 = arith.constant 0 : index
    %41 = vector.load %arg9[%c0_32, %c0_33] : memref<56x128xf32, #tpu.memory_space<vmem>>, vector<56x128xf32>
    tpu.vector_store %arg9[%c0_32, %c0_33], %40 {strides = array<i32>} : memref<56x128xf32, #tpu.memory_space<vmem>>, vector<56x128xf32>,
    %42 = arith.mulf %29, %29 : vector<16x128xf32>
    %cst_34 = arith.constant dense<0.000000e+00> : vector<16xf32>
    %43 = vector.multi_reduction <add>, %42, %cst_34 [1] : vector<16x128xf32> to vector<16xf32>
    %44 = vector.shape_cast %43 : vector<16xf32> to vector<16x1xf32>
    %45 = math.sqrt %44 : vector<16x1xf32>
    %cst_35 = arith.constant 9.99999996E-13 : f32
    %46 = vector.broadcast %cst_35 : f32 to vector<16x1xf32>
    %47 = arith.maximumf %45, %46 : vector<16x1xf32>
    %48 = vector.broadcast %47 : vector<16x1xf32> to vector<16x128xf32>
    %49 = arith.divf %29, %48 : vector<16x128xf32>
    %cst_36 = arith.constant 2.000000e+00 : f32
    %50 = vector.broadcast %cst_36 : f32 to vector<16x128xf32>
    %51 = arith.mulf %50, %49 : vector<16x128xf32>
    %52 = arith.addf %11, %51 : vector<16x128xf32>
    %c0_37 = arith.constant 0 : index
    %c0_38 = arith.constant 0 : index
    %53 = vector.load %arg10[%c0_37, %c0_38] : memref<16x128xf32, #tpu.memory_space<vmem>>, vector<16x128xf32>
    tpu.vector_store %arg10[%c0_37, %c0_38], %52 {strides = array<i32>} : memref<16x128xf32, #tpu.memory_space<vmem>>, vector<16x128xf32>,
    return
  }
}

</mosaic_0001>

<llo_original>
// kernel: kgin_forward.1
$region0: #{kgin_forward.1}
  #allocation0 [shape = 'u32[]', space=smem, size = 0x4, offset = 0x4, fixed_abs, tag = 'smem constant byte address 0x4 - core index']
  #allocation1 [shape = 'u32[144,128]{1,0:T(1,128)}', space=vmem, size = 0x12000, scoped, tag = 'internal scratch']
  #allocation2 [shape = 'f32[56,128]{1,0:T(8,128)}', space=vmem, size = 0x7000, scoped, tag = 'scratch operand']
  %s0 = inlined_call_operand.vmem [shape: f32[56,56], index: 0, kind: input, shape index: {}]
  %s1 = inlined_call_operand.vmem [shape: f32[56,8], index: 1, kind: input, shape index: {}]
  %s2 = inlined_call_operand.vmem [shape: f32[24,128], index: 2, kind: input, shape index: {}]
  %s3 = inlined_call_operand.vmem [shape: f32[32,128], index: 3, kind: input, shape index: {}]
  %s4 = inlined_call_operand.vmem [shape: f32[8,128], index: 4, kind: input, shape index: {}]
  %s5 = inlined_call_operand.vmem [shape: f32[16,128], index: 5, kind: input, shape index: {}]
  %s6 = inlined_call_operand.vmem [shape: f32[4,128], index: 6, kind: input, shape index: {}]
  %s7 = inlined_call_operand.vmem [shape: f32[16,56], index: 7, kind: input, shape index: {}]
  %s8 = inlined_call_operand.vmem [shape: f32[4,128], index: 8, kind: input, shape index: {}]
  %s9 = inlined_call_operand.vmem [shape: f32[56,128], index: 9, kind: output, shape index: {0}]
  %s10 = inlined_call_operand.vmem [shape: f32[16,128], index: 10, kind: output, shape index: {1}]
  %11 = xla_tuple %s9, %s10
  %s12 = sld [smem:[#allocation0]]
  $region54: #{kgin_forward.1} parent=0
    _
  %s14 = ssub.s32 1, %s12
  %s15 = scalar_select 0, %s14, %s12
  // Predicated region
  $region2: #{kgin_forward.1} parent=0 // pred_check
    _
  $region3: #{kgin_forward.1} parent=0 // pred_check_branch
    %17 = sbr.rel (0) target = $region5
  $region4: #{kgin_forward.1} parent=0 // pred_region
    _
  $region5: #{kgin_forward.1} parent=0 // pred_fallthru
    _
  // Predicated region
  $region6: #{kgin_forward.1} parent=0 // pred_check
    _
  $region7: #{kgin_forward.1} parent=0 // pred_check_branch
    %19 = sbr.rel (0) target = $region9
  $region8: #{kgin_forward.1} parent=0 // pred_region
    _
  $region9: #{kgin_forward.1} parent=0 // pred_fallthru
    _
  // Predicated region
  $region10: #{kgin_forward.1} parent=0 // pred_check
    _
  $region11: #{kgin_forward.1} parent=0 // pred_check_branch
    %21 = sbr.rel (0) target = $region13
  $region12: #{kgin_forward.1} parent=0 // pred_region
    _
  $region13: #{kgin_forward.1} parent=0 // pred_fallthru
    _
  // Predicated region
  $region14: #{kgin_forward.1} parent=0 // pred_check
    _
  $region15: #{kgin_forward.1} parent=0 // pred_check_branch
    %23 = sbr.rel (0) target = $region17
  $region16: #{kgin_forward.1} parent=0 // pred_region
    _
  $region17: #{kgin_forward.1} parent=0 // pred_fallthru
    _
  // Predicated region
  $region18: #{kgin_forward.1} parent=0 // pred_check
    _
  $region19: #{kgin_forward.1} parent=0 // pred_check_branch
    %25 = sbr.rel (0) target = $region21
  $region20: #{kgin_forward.1} parent=0 // pred_region
    _
  $region21: #{kgin_forward.1} parent=0 // pred_fallthru
    _
  // Predicated region
  $region22: #{kgin_forward.1} parent=0 // pred_check
    _
  $region23: #{kgin_forward.1} parent=0 // pred_check_branch
    %27 = sbr.rel (0) target = $region25
  $region24: #{kgin_forward.1} parent=0 // pred_region
    _
  $region25: #{kgin_forward.1} parent=0 // pred_fallthru
    _
  // Predicated region
  $region26: #{kgin_forward.1} parent=0 // pred_check
    _
  $region27: #{kgin_forward.1} parent=0 // pred_check_branch
    %29 = sbr.rel (0) target = $region29
  $region28: #{kgin_forward.1} parent=0 // pred_region
    _
  $region29: #{kgin_forward.1} parent=0 // pred_fallthru
    _
  // Predicated region
  $region30: #{kgin_forward.1} parent=0 // pred_check
    _
  $region31: #{kgin_forward.1} parent=0 // pred_check_branch
    %31 = sbr.rel (0) target = $region33
  $region32: #{kgin_forward.1} parent=0 // pred_region
    _
  $region33: #{kgin_forward.1} parent=0 // pred_fallthru
    _
  // Predicated region
  $region34: #{kgin_forward.1} parent=0 // pred_check
    _
  $region35: #{kgin_forward.1} parent=0 // pred_check_branch
    %33 = sbr.rel (0) target = $region37
  $region36: #{kgin_forward.1} parent=0 // pred_region
    _
  $region37: #{kgin_forward.1} parent=0 // pred_fallthru
    _
  %v34 = vld [vmem:[%s2] sm:$0xff]
  %v35 = vld [vmem:[%s2 + $0x8] sm:$0xff]
  %v36 = vld [vmem:[%s2 + $0x10] sm:$0xff]
  %37 = vst [vmem:[#allocation2] sm:$0xff] %v34
  %38 = vst [vmem:[#allocation2 + $0x8] sm:$0xff] %v35
  %39 = vst [vmem:[#allocation2 + $0x10] sm:$0xff] %v36
  %v40 = vld [vmem:[%s3] sm:$0xff]
  %v41 = vld [vmem:[%s3 + $0x8] sm:$0xff]
  %v42 = vld [vmem:[%s3 + $0x10] sm:$0xff]
  %v43 = vld [vmem:[%s3 + $0x18] sm:$0xff]
  %44 = vst [vmem:[#allocation2 + $0x18] sm:$0xff] %v40
  %45 = vst [vmem:[#allocation2 + $0x20] sm:$0xff] %v41
  %46 = vst [vmem:[#allocation2 + $0x28] sm:$0xff] %v42
  %47 = vst [vmem:[#allocation2 + $0x30] sm:$0xff] %v43
  %v48 = vld [vmem:[#allocation2] sm:$0xff]
  %v49 = vld [vmem:[#allocation2 + $0x8] sm:$0xff]
  %v50 = vld [vmem:[#allocation2 + $0x10] sm:$0xff]
  %v51 = vld [vmem:[#allocation2 + $0x18] sm:$0xff]
  %v52 = vld [vmem:[#allocation2 + $0x20] sm:$0xff]
  %v53 = vld [vmem:[#allocation2 + $0x28] sm:$0xff]
  %v54 = vld [vmem:[#allocation2 + $0x30] sm:$0xff]
  %v55 = vld [vmem:[%s0] sm:$0xff]
  %v56 = vld [vmem:[%s0 + $0x8] sm:$0xff]
  %v57 = vld [vmem:[%s0 + $0x10] sm:$0xff]
  %v58 = vld [vmem:[%s0 + $0x18] sm:$0xff]
  %v59 = vld [vmem:[%s0 + $0x20] sm:$0xff]
  %v60 = vld [vmem:[%s0 + $0x28] sm:$0xff]
  %v61 = vld [vmem:[%s0 + $0x30] sm:$0xff]
  %v62 = vld [vmem:[%s1] sm:$0xff]
  %v63 = vld [vmem:[%s1 + $0x8] sm:$0xff]
  %v64 = vld [vmem:[%s1 + $0x10] sm:$0xff]
  %v65 = vld [vmem:[%s1 + $0x18] sm:$0xff]
  %v66 = vld [vmem:[%s1 + $0x20] sm:$0xff]
  %v67 = vld [vmem:[%s1 + $0x28] sm:$0xff]
  %v68 = vld [vmem:[%s1 + $0x30] sm:$0xff]
  %v69 = vld [vmem:[%s4] sm:$0xff]
  %vm70 = vcmask 64512
  %v72 = vsel %vm70, %v62, 0
  %v75 = vsel %vm70, %v63, 0
  %v78 = vsel %vm70, %v64, 0
  %v81 = vsel %vm70, %v65, 0
  %v84 = vsel %vm70, %v66, 0
  %v87 = vsel %vm70, %v67, 0
  %v90 = vsel %vm70, %v68, 0
  %92 = vmatprep.subr.mxu0 0.0
  %93 = vmatpush1.msra.mxu0 %v69
  %94 = vmatprep.subr.mxu0 0.0
  %95 = vmatpush1.msra.mxu0 0.0
  %96 = vmatprep.subr.mxu0 0.0
  %97 = vmatpush1.msra.mxu0 0.0
  %98 = vmatprep.subr.mxu0 0.0
  %99 = vmatpush1.msra.mxu0 0.0
  %100 = vmatprep.subr.mxu0 0.0
  %101 = vmatpush1.msra.mxu0 0.0
  %102 = vmatprep.subr.mxu0 0.0
  %103 = vmatpush1.msra.mxu0 0.0
  %104 = vmatprep.subr.mxu0 0.0
  %105 = vmatpush1.msra.mxu0 0.0
  %106 = vmatprep.subr.mxu0 0.0
  %107 = vmatpush1.msra.mxu0 0.0
  %108 = vmatprep.subr.mxu0 0.0
  %109 = vmatpush1.msra.mxu0 0.0
  %110 = vmatprep.subr.mxu0 0.0
  %111 = vmatpush1.msra.mxu0 0.0
  %112 = vmatprep.subr.mxu0 0.0
  %113 = vmatpush1.msra.mxu0 0.0
  %114 = vmatprep.subr.mxu0 0.0
  %115 = vmatpush1.msra.mxu0 0.0
  %116 = vmatprep.subr.mxu0 0.0
  %117 = vmatpush1.msra.mxu0 0.0
  %118 = vmatprep.subr.mxu0 0.0
  %119 = vmatpush1.msra.mxu0 0.0
  %120 = vmatprep.subr.mxu0 0.0
  %121 = vmatpush1.msra.mxu0 0.0
  %122 = vmatprep.subr.mxu0 0.0
  %123 = vmatpush1.msra.mxu0 0.0
  %124 = vmatprep.subr.mxu0 0.0
  %125 = vmatpush1.msra.mxu0 0.0
  %126 = vmatprep.subr.mxu0 0.0
  %127 = vmatpush1.msra.mxu0 0.0
  %128 = vmatprep.subr.mxu0 0.0
  %129 = vmatpush1.msra.mxu0 0.0
  %130 = vmatprep.subr.mxu0 0.0
  %131 = vmatpush1.msra.mxu0 0.0
  %132 = vmatprep.subr.mxu0 0.0
  %133 = vmatpush1.msra.mxu0 0.0
  %134 = vmatprep.subr.mxu0 0.0
  %135 = vmatpush1.msra.mxu0 0.0
  %136 = vmatprep.subr.mxu0 0.0
  %137 = vmatpush1.msra.mxu0 0.0
  %138 = vmatprep.subr.mxu0 0.0
  %139 = vmatpush1.msra.mxu0 0.0
  %140 = vmatprep.subr.mxu0 0.0
  %141 = vmatpush1.msra.mxu0 0.0
  %142 = vmatprep.subr.mxu0 0.0
  %143 = vmatpush1.msra.mxu0 0.0
  %144 = vmatprep.subr.mxu0 0.0
  %145 = vmatpush1.msra.mxu0 0.0
  %146 = vmatprep.subr.mxu0 0.0
  %147 = vmatpush1.msra.mxu0 0.0
  %148 = vmatprep.subr.mxu0 0.0
  %149 = vmatpush1.msra.mxu0 0.0
  %150 = vmatprep.subr.mxu0 0.0
  %151 = vmatpush1.msra.mxu0 0.0
  %152 = vmatprep.subr.mxu0 0.0
  %153 = vmatpush1.msra.mxu0 0.0
  %154 = vmatprep.subr.mxu0 0.0
  %155 = vmatpush1.msra.mxu0 0.0
  %156 = vmatprep.mubr.f32.mxu0 0.0
  %157 = vmatmul.mubr.f32.gmra.mrb[0].mxu0 %v72
  %v158 = vpop.f32.mrb[0].mxu0
  %v159 = vadd.f32 0.0, %v158
  %v160 = vpop.f32.mrb[0].mxu0
  %161 = vmatprep.mubr.f32.mxu0 0.0
  %162 = vmatmul.mubr.f32.gmra.mrb[0].mxu0 %v75
  %v163 = vpop.f32.mrb[0].mxu0
  %v164 = vadd.f32 0.0, %v163
  %v165 = vpop.f32.mrb[0].mxu0
  %166 = vmatprep.mubr.f32.mxu0 0.0
  %167 = vmatmul.mubr.f32.gmra.mrb[0].mxu0 %v78
  %v168 = vpop.f32.mrb[0].mxu0
  %v169 = vadd.f32 0.0, %v168
  %v170 = vpop.f32.mrb[0].mxu0
  %171 = vmatprep.mubr.f32.mxu0 0.0
  %172 = vmatmul.mubr.f32.gmra.mrb[0].mxu0 %v81
  %v173 = vpop.f32.mrb[0].mxu0
  %v174 = vadd.f32 0.0, %v173
  %v175 = vpop.f32.mrb[0].mxu0
  %176 = vmatprep.mubr.f32.mxu0 0.0
  %177 = vmatmul.mubr.f32.gmra.mrb[0].mxu0 %v84
  %v178 = vpop.f32.mrb[0].mxu0
  %v179 = vadd.f32 0.0, %v178
  %v180 = vpop.f32.mrb[0].mxu0
  %181 = vmatprep.mubr.f32.mxu0 0.0
  %182 = vmatmul.mubr.f32.gmra.mrb[0].mxu0 %v87
  %v183 = vpop.f32.mrb[0].mxu0
  %v184 = vadd.f32 0.0, %v183
  %v185 = vpop.f32.mrb[0].mxu0
  %186 = vmatprep.mubr.f32.mxu0 0.0
  %187 = vmatmul.mubr.f32.gmra.mrb[0].mxu0 %v90
  %v188 = vpop.f32.mrb[0].mxu0
  %v189 = vadd.f32 0.0, %v188
  %v190 = vpop.f32.mrb[0].mxu0
  %191 = vdwg.mxu0
  %vm192 = vcmask 457728
  %v194 = vsel %vm192, %v55, 0
  %v197 = vsel %vm192, %v56, 0
  %v200 = vsel %vm192, %v57, 0
  %v203 = vsel %vm192, %v58, 0
  %v206 = vsel %vm192, %v59, 0
  %v209 = vsel %vm192, %v60, 0
  %v212 = vsel %vm192, %v61, 0
  %214 = vmatprep.subr.mxu0 0.0
  %215 = vmatpush1.msra.mxu0 %v48
  %216 = vmatprep.subr.mxu0 0.0
  %217 = vmatpush1.msra.mxu0 %v49
  %218 = vmatprep.subr.mxu0 0.0
  %219 = vmatpush1.msra.mxu0 %v50
  %220 = vmatprep.subr.mxu0 0.0
  %221 = vmatpush1.msra.mxu0 %v51
  %222 = vmatprep.subr.mxu0 0.0
  %223 = vmatpush1.msra.mxu0 %v52
  %224 = vmatprep.subr.mxu0 0.0
  %225 = vmatpush1.msra.mxu0 %v53
  %226 = vmatprep.subr.mxu0 0.0
  %227 = vmatpush1.msra.mxu0 %v54
  %228 = vmatprep.subr.mxu0 0.0
  %229 = vmatpush1.msra.mxu0 0.0
  %230 = vmatprep.subr.mxu0 0.0
  %231 = vmatpush1.msra.mxu0 0.0
  %232 = vmatprep.subr.mxu0 0.0
  %233 = vmatpush1.msra.mxu0 0.0
  %234 = vmatprep.subr.mxu0 0.0
  %235 = vmatpush1.msra.mxu0 0.0
  %236 = vmatprep.subr.mxu0 0.0
  %237 = vmatpush1.msra.mxu0 0.0
  %238 = vmatprep.subr.mxu0 0.0
  %239 = vmatpush1.msra.mxu0 0.0
  %240 = vmatprep.subr.mxu0 0.0
  %241 = vmatpush1.msra.mxu0 0.0
  %242 = vmatprep.subr.mxu0 0.0
  %243 = vmatpush1.msra.mxu0 0.0
  %244 = vmatprep.subr.mxu0 0.0
  %245 = vmatpush1.msra.mxu0 0.0
  %246 = vmatprep.subr.mxu0 0.0
  %247 = vmatpush1.msra.mxu0 0.0
  %248 = vmatprep.subr.mxu0 0.0
  %249 = vmatpush1.msra.mxu0 0.0
  %250 = vmatprep.subr.mxu0 0.0
  %251 = vmatpush1.msra.mxu0 0.0
  %252 = vmatprep.subr.mxu0 0.0
  %253 = vmatpush1.msra.mxu0 0.0
  %254 = vmatprep.subr.mxu0 0.0
  %255 = vmatpush1.msra.mxu0 0.0
  %256 = vmatprep.subr.mxu0 0.0
  %257 = vmatpush1.msra.mxu0 0.0
  %258 = vmatprep.subr.mxu0 0.0
  %259 = vmatpush1.msra.mxu0 0.0
  %260 = vmatprep.subr.mxu0 0.0
  %261 = vmatpush1.msra.mxu0 0.0
  %262 = vmatprep.subr.mxu0 0.0
  %263 = vmatpush1.msra.mxu0 0.0
  %264 = vmatprep.subr.mxu0 0.0
  %265 = vmatpush1.msra.mxu0 0.0
  %266 = vmatprep.subr.mxu0 0.0
  %267 = vmatpush1.msra.mxu0 0.0
  %268 = vmatprep.subr.mxu0 0.0
  %269 = vmatpush1.msra.mxu0 0.0
  %270 = vmatprep.subr.mxu0 0.0
  %271 = vmatpush1.msra.mxu0 0.0
  %272 = vmatprep.subr.mxu0 0.0
  %273 = vmatpush1.msra.mxu0 0.0
  %274 = vmatprep.subr.mxu0 0.0
  %275 = vmatpush1.msra.mxu0 0.0
  %276 = vmatprep.subr.mxu0 0.0
  %277 = vmatpush1.msra.mxu0 0.0
  %278 = vmatprep.mubr.f32.mxu0 0.0
  %279 = vmatmul.mubr.f32.gmra.mrb[0].mxu0 %v194
  %v280 = vpop.f32.mrb[0].mxu0
  %v281 = vadd.f32 %v159, %v280
  %v282 = vpop.f32.mrb[0].mxu0
  %283 = vmatprep.mubr.f32.mxu0 0.0
  %284 = vmatmul.mubr.f32.gmra.mrb[0].mxu0 %v197
  %v285 = vpop.f32.mrb[0].mxu0
  %v286 = vadd.f32 %v164, %v285
  %v287 = vpop.f32.mrb[0].mxu0
  %288 = vmatprep.mubr.f32.mxu0 0.0
  %289 = vmatmul.mubr.f32.gmra.mrb[0].mxu0 %v200
  %v290 = vpop.f32.mrb[0].mxu0
  %v291 = vadd.f32 %v169, %v290
  %v292 = vpop.f32.mrb[0].mxu0
  %293 = vmatprep.mubr.f32.mxu0 0.0
  %294 = vmatmul.mubr.f32.gmra.mrb[0].mxu0 %v203
  %v295 = vpop.f32.mrb[0].mxu0
  %v296 = vadd.f32 %v174, %v295
  %v297 = vpop.f32.mrb[0].mxu0
  %298 = vmatprep.mubr.f32.mxu0 0.0
  %299 = vmatmul.mubr.f32.gmra.mrb[0].mxu0 %v206
  %v300 = vpop.f32.mrb[0].mxu0
  %v301 = vadd.f32 %v179, %v300
  %v302 = vpop.f32.mrb[0].mxu0
  %303 = vmatprep.mubr.f32.mxu0 0.0
  %304 = vmatmul.mubr.f32.gmra.mrb[0].mxu0 %v209
  %v305 = vpop.f32.mrb[0].mxu0
  %v306 = vadd.f32 %v184, %v305
  %v307 = vpop.f32.mrb[0].mxu0
  %308 = vmatprep.mubr.f32.mxu0 0.0
  %309 = vmatmul.mubr.f32.gmra.mrb[0].mxu0 %v212
  %v310 = vpop.f32.mrb[0].mxu0
  %v311 = vadd.f32 %v189, %v310
  %v312 = vpop.f32.mrb[0].mxu0
  %313 = vdwg.mxu0
  %v314 = vld [vmem:[%s5] sm:$0xff]
  %v315 = vld [vmem:[%s5 + $0x8] sm:$0xff]
  %v316 = vld [vmem:[%s6] sm:$0xf]
  %317 = vmatprep.subr.mxu0 0.0
  %318 = vmatpush1.xpose.msra.mxu0 %v316
  %319 = vmatprep.subr.mxu0 0.0
  %320 = vmatpush1.xpose.msra.mxu0 0.0
  %321 = vmatprep.subr.mxu0 0.0
  %322 = vmatpush1.xpose.msra.mxu0 0.0
  %323 = vmatprep.subr.mxu0 0.0
  %324 = vmatpush1.xpose.msra.mxu0 0.0
  %325 = vmatprep.subr.mxu0 0.0
  %326 = vmatpush1.xpose.msra.mxu0 0.0
  %327 = vmatprep.subr.mxu0 0.0
  %328 = vmatpush1.xpose.msra.mxu0 0.0
  %329 = vmatprep.subr.mxu0 0.0
  %330 = vmatpush1.xpose.msra.mxu0 0.0
  %331 = vmatprep.subr.mxu0 0.0
  %332 = vmatpush1.xpose.msra.mxu0 0.0
  %333 = vmatprep.subr.mxu0 0.0
  %334 = vmatpush1.xpose.msra.mxu0 0.0
  %335 = vmatprep.subr.mxu0 0.0
  %336 = vmatpush1.xpose.msra.mxu0 0.0
  %337 = vmatprep.subr.mxu0 0.0
  %338 = vmatpush1.xpose.msra.mxu0 0.0
  %339 = vmatprep.subr.mxu0 0.0
  %340 = vmatpush1.xpose.msra.mxu0 0.0
  %341 = vmatprep.subr.mxu0 0.0
  %342 = vmatpush1.xpose.msra.mxu0 0.0
  %343 = vmatprep.subr.mxu0 0.0
  %344 = vmatpush1.xpose.msra.mxu0 0.0
  %345 = vmatprep.subr.mxu0 0.0
  %346 = vmatpush1.xpose.msra.mxu0 0.0
  %347 = vmatprep.subr.mxu0 0.0
  %348 = vmatpush1.xpose.msra.mxu0 0.0
  %349 = vmatprep.subr.mxu0 0.0
  %350 = vmatpush1.xpose.msra.mxu0 0.0
  %351 = vmatprep.subr.mxu0 0.0
  %352 = vmatpush1.xpose.msra.mxu0 0.0
  %353 = vmatprep.subr.mxu0 0.0
  %354 = vmatpush1.xpose.msra.mxu0 0.0
  %355 = vmatprep.subr.mxu0 0.0
  %356 = vmatpush1.xpose.msra.mxu0 0.0
  %357 = vmatprep.subr.mxu0 0.0
  %358 = vmatpush1.xpose.msra.mxu0 0.0
  %359 = vmatprep.subr.mxu0 0.0
  %360 = vmatpush1.xpose.msra.mxu0 0.0
  %361 = vmatprep.subr.mxu0 0.0
  %362 = vmatpush1.xpose.msra.mxu0 0.0
  %363 = vmatprep.subr.mxu0 0.0
  %364 = vmatpush1.xpose.msra.mxu0 0.0
  %365 = vmatprep.subr.mxu0 0.0
  %366 = vmatpush1.xpose.msra.mxu0 0.0
  %367 = vmatprep.subr.mxu0 0.0
  %368 = vmatpush1.xpose.msra.mxu0 0.0
  %369 = vmatprep.subr.mxu0 0.0
  %370 = vmatpush1.xpose.msra.mxu0 0.0
  %371 = vmatprep.subr.mxu0 0.0
  %372 = vmatpush1.xpose.msra.mxu0 0.0
  %373 = vmatprep.subr.mxu0 0.0
  %374 = vmatpush1.xpose.msra.mxu0 0.0
  %375 = vmatprep.subr.mxu0 0.0
  %376 = vmatpush1.xpose.msra.mxu0 0.0
  %377 = vmatprep.subr.mxu0 0.0
  %378 = vmatpush1.xpose.msra.mxu0 0.0
  %379 = vmatprep.subr.mxu0 0.0
  %380 = vmatpush1.xpose.msra.mxu0 0.0
  %381 = vmatprep.mubr.f32.mxu0 0.0
  %382 = vmatmul.mubr.f32.gmra.mrb[0].mxu0 %v314
  %v383 = vpop.f32.mrb[0].mxu0
  %v384 = vadd.f32 0.0, %v383
  %v385 = vpop.f32.mrb[0].mxu0
  %386 = vmatprep.mubr.f32.mxu0 0.0
  %387 = vmatmul.mubr.f32.gmra.mrb[0].mxu0 %v315
  %v388 = vpop.f32.mrb[0].mxu0
  %v389 = vadd.f32 0.0, %v388
  %v390 = vpop.f32.mrb[0].mxu0
  %391 = vdwg.mxu0
  %vm392 = vcmask 31744
  %v393 = vsel %vm392, %v384, -inf
  %394 = vmax.xlane.f32.xlu0 %v393
  %v395 = vpop.xlane.xlu0 %394
  %v396 = vsel %vm392, %v389, -inf
  %397 = vmax.xlane.f32.xlu0 %v396
  %v398 = vpop.xlane.xlu0 %397
  %v399 = vsub.f32 %v384, %v395
  %v400 = vsub.f32 %v389, %v398
  %v401 = vmul.f32 %v399, 1.442695
  %v402 = vpow.pop %v401
  %v403 = vmul.f32 %v400, 1.442695
  %v404 = vpow.pop %v403
  %v405 = vsel %vm392, %v402, 0.0
  %406 = vadd.xlane.f32.xlu0 %v405
  %v407 = vpop.xlane.xlu0 %406
  %v408 = vsel %vm392, %v404, 0.0
  %409 = vadd.xlane.f32.xlu0 %v408
  %v410 = vpop.xlane.xlu0 %409
  %v411 = vrcp.pop %v407
  %v412 = vmul.f32 %v402, %v411
  %v413 = vrcp.pop %v410
  %v414 = vmul.f32 %v404, %v413
  %v415 = vld [vmem:[%s7] sm:$0xff]
  %v416 = vld [vmem:[%s7 + $0x8] sm:$0xff]
  %v418 = vsel %vm192, %v415, 0
  %v421 = vsel %vm192, %v416, 0
  %423 = vmatprep.subr.mxu0 0.0
  %424 = vmatpush1.msra.mxu0 %v281
  %425 = vmatprep.subr.mxu0 0.0
  %426 = vmatpush1.msra.mxu0 %v286
  %427 = vmatprep.subr.mxu0 0.0
  %428 = vmatpush1.msra.mxu0 %v291
  %429 = vmatprep.subr.mxu0 0.0
  %430 = vmatpush1.msra.mxu0 %v296
  %431 = vmatprep.subr.mxu0 0.0
  %432 = vmatpush1.msra.mxu0 %v301
  %433 = vmatprep.subr.mxu0 0.0
  %434 = vmatpush1.msra.mxu0 %v306
  %435 = vmatprep.subr.mxu0 0.0
  %436 = vmatpush1.msra.mxu0 %v311
  %437 = vmatprep.subr.mxu0 0.0
  %438 = vmatpush1.msra.mxu0 0.0
  %439 = vmatprep.subr.mxu0 0.0
  %440 = vmatpush1.msra.mxu0 0.0
  %441 = vmatprep.subr.mxu0 0.0
  %442 = vmatpush1.msra.mxu0 0.0
  %443 = vmatprep.subr.mxu0 0.0
  %444 = vmatpush1.msra.mxu0 0.0
  %445 = vmatprep.subr.mxu0 0.0
  %446 = vmatpush1.msra.mxu0 0.0
  %447 = vmatprep.subr.mxu0 0.0
  %448 = vmatpush1.msra.mxu0 0.0
  %449 = vmatprep.subr.mxu0 0.0
  %450 = vmatpush1.msra.mxu0 0.0
  %451 = vmatprep.subr.mxu0 0.0
  %452 = vmatpush1.msra.mxu0 0.0
  %453 = vmatprep.subr.mxu0 0.0
  %454 = vmatpush1.msra.mxu0 0.0
  %455 = vmatprep.subr.mxu0 0.0
  %456 = vmatpush1.msra.mxu0 0.0
  %457 = vmatprep.subr.mxu0 0.0
  %458 = vmatpush1.msra.mxu0 0.0
  %459 = vmatprep.subr.mxu0 0.0
  %460 = vmatpush1.msra.mxu0 0.0
  %461 = vmatprep.subr.mxu0 0.0
  %462 = vmatpush1.msra.mxu0 0.0
  %463 = vmatprep.subr.mxu0 0.0
  %464 = vmatpush1.msra.mxu0 0.0
  %465 = vmatprep.subr.mxu0 0.0
  %466 = vmatpush1.msra.mxu0 0.0
  %467 = vmatprep.subr.mxu0 0.0
  %468 = vmatpush1.msra.mxu0 0.0
  %469 = vmatprep.subr.mxu0 0.0
  %470 = vmatpush1.msra.mxu0 0.0
  %471 = vmatprep.subr.mxu0 0.0
  %472 = vmatpush1.msra.mxu0 0.0
  %473 = vmatprep.subr.mxu0 0.0
  %474 = vmatpush1.msra.mxu0 0.0
  %475 = vmatprep.subr.mxu0 0.0
  %476 = vmatpush1.msra.mxu0 0.0
  %477 = vmatprep.subr.mxu0 0.0
  %478 = vmatpush1.msra.mxu0 0.0
  %479 = vmatprep.subr.mxu0 0.0
  %480 = vmatpush1.msra.mxu0 0.0
  %481 = vmatprep.subr.mxu0 0.0
  %482 = vmatpush1.msra.mxu0 0.0
  %483 = vmatprep.subr.mxu0 0.0
  %484 = vmatpush1.msra.mxu0 0.0
  %485 = vmatprep.subr.mxu0 0.0
  %486 = vmatpush1.msra.mxu0 0.0
  %487 = vmatprep.mubr.f32.mxu0 0.0
  %488 = vmatmul.mubr.f32.gmra.mrb[0].mxu0 %v418
  %v489 = vpop.f32.mrb[0].mxu0
  %v490 = vadd.f32 0.0, %v489
  %v491 = vpop.f32.mrb[0].mxu0
  %492 = vmatprep.mubr.f32.mxu0 0.0
  %493 = vmatmul.mubr.f32.gmra.mrb[0].mxu0 %v421
  %v494 = vpop.f32.mrb[0].mxu0
  %v495 = vadd.f32 0.0, %v494
  %v496 = vpop.f32.mrb[0].mxu0
  %497 = vdwg.mxu0
  %v498 = vld [vmem:[%s8] sm:$0xf]
  %v500 = vsel %vm392, %v412, 0
  %v503 = vsel %vm392, %v414, 0
  %vm505 = vcmask 1043456
  %v507 = vsel %vm505, %v498, 0
  %509 = vmatprep.subr.mxu0 0.0
  %510 = vmatpush1.msra.mxu0 %v507
  %511 = vmatprep.subr.mxu0 0.0
  %512 = vmatpush1.msra.mxu0 0.0
  %513 = vmatprep.subr.mxu0 0.0
  %514 = vmatpush1.msra.mxu0 0.0
  %515 = vmatprep.subr.mxu0 0.0
  %516 = vmatpush1.msra.mxu0 0.0
  %517 = vmatprep.subr.mxu0 0.0
  %518 = vmatpush1.msra.mxu0 0.0
  %519 = vmatprep.subr.mxu0 0.0
  %520 = vmatpush1.msra.mxu0 0.0
  %521 = vmatprep.subr.mxu0 0.0
  %522 = vmatpush1.msra.mxu0 0.0
  %523 = vmatprep.subr.mxu0 0.0
  %524 = vmatpush1.msra.mxu0 0.0
  %525 = vmatprep.subr.mxu0 0.0
  %526 = vmatpush1.msra.mxu0 0.0
  %527 = vmatprep.subr.mxu0 0.0
  %528 = vmatpush1.msra.mxu0 0.0
  %529 = vmatprep.subr.mxu0 0.0
  %530 = vmatpush1.msra.mxu0 0.0
  %531 = vmatprep.subr.mxu0 0.0
  %532 = vmatpush1.msra.mxu0 0.0
  %533 = vmatprep.subr.mxu0 0.0
  %534 = vmatpush1.msra.mxu0 0.0
  %535 = vmatprep.subr.mxu0 0.0
  %536 = vmatpush1.msra.mxu0 0.0
  %537 = vmatprep.subr.mxu0 0.0
  %538 = vmatpush1.msra.mxu0 0.0
  %539 = vmatprep.subr.mxu0 0.0
  %540 = vmatpush1.msra.mxu0 0.0
  %541 = vmatprep.subr.mxu0 0.0
  %542 = vmatpush1.msra.mxu0 0.0
  %543 = vmatprep.subr.mxu0 0.0
  %544 = vmatpush1.msra.mxu0 0.0
  %545 = vmatprep.subr.mxu0 0.0
  %546 = vmatpush1.msra.mxu0 0.0
  %547 = vmatprep.subr.mxu0 0.0
  %548 = vmatpush1.msra.mxu0 0.0
  %549 = vmatprep.subr.mxu0 0.0
  %550 = vmatpush1.msra.mxu0 0.0
  %551 = vmatprep.subr.mxu0 0.0
  %552 = vmatpush1.msra.mxu0 0.0
  %553 = vmatprep.subr.mxu0 0.0
  %554 = vmatpush1.msra.mxu0 0.0
  %555 = vmatprep.subr.mxu0 0.0
  %556 = vmatpush1.msra.mxu0 0.0
  %557 = vmatprep.subr.mxu0 0.0
  %558 = vmatpush1.msra.mxu0 0.0
  %559 = vmatprep.subr.mxu0 0.0
  %560 = vmatpush1.msra.mxu0 0.0
  %561 = vmatprep.subr.mxu0 0.0
  %562 = vmatpush1.msra.mxu0 0.0
  %563 = vmatprep.subr.mxu0 0.0
  %564 = vmatpush1.msra.mxu0 0.0
  %565 = vmatprep.subr.mxu0 0.0
  %566 = vmatpush1.msra.mxu0 0.0
  %567 = vmatprep.subr.mxu0 0.0
  %568 = vmatpush1.msra.mxu0 0.0
  %569 = vmatprep.subr.mxu0 0.0
  %570 = vmatpush1.msra.mxu0 0.0
  %571 = vmatprep.subr.mxu0 0.0
  %572 = vmatpush1.msra.mxu0 0.0
  %573 = vmatprep.mubr.f32.mxu0 0.0
  %574 = vmatmul.mubr.f32.gmra.mrb[0].mxu0 %v500
  %v575 = vpop.f32.mrb[0].mxu0
  %v576 = vadd.f32 1.0, %v575
  %v577 = vpop.f32.mrb[0].mxu0
  %578 = vmatprep.mubr.f32.mxu0 0.0
  %579 = vmatmul.mubr.f32.gmra.mrb[0].mxu0 %v503
  %v580 = vpop.f32.mrb[0].mxu0
  %v581 = vadd.f32 1.0, %v580
  %v582 = vpop.f32.mrb[0].mxu0
  %583 = vdwg.mxu0
  %v584 = vmul.f32 %v490, %v576
  %v585 = vmul.f32 %v495, %v581
  %v586 = vmul.f32 %v281, %v281
  %v587 = vmul.f32 %v286, %v286
  %v588 = vmul.f32 %v291, %v291
  %v589 = vmul.f32 %v296, %v296
  %v590 = vmul.f32 %v301, %v301
  %v591 = vmul.f32 %v306, %v306
  %v592 = vmul.f32 %v311, %v311
  %593 = vadd.xlane.f32.xlu0 %v586
  %v594 = vpop.xlane.xlu0 %593
  %595 = vadd.xlane.f32.xlu0 %v587
  %v596 = vpop.xlane.xlu0 %595
  %597 = vadd.xlane.f32.xlu0 %v588
  %v598 = vpop.xlane.xlu0 %597
  %599 = vadd.xlane.f32.xlu0 %v589
  %v600 = vpop.xlane.xlu0 %599
  %601 = vadd.xlane.f32.xlu0 %v590
  %v602 = vpop.xlane.xlu0 %601
  %603 = vadd.xlane.f32.xlu0 %v591
  %v604 = vpop.xlane.xlu0 %603
  %605 = vadd.xlane.f32.xlu0 %v592
  %v606 = vpop.xlane.xlu0 %605
  %v607 = vrsqrt.pop %v594
  %v608 = vmul.f32 %v594, %v607
  %vm609 = vcmp.eq.f32.partialorder %v594, inf
  %v610 = vsel %vm609, %v594, %v608
  %vm611 = vcmp.eq.f32.partialorder %v594, 0.0
  %v612 = vand.u32 %v594, 2147483648
  %v613 = vsel %vm611, %v612, %v610
  %v614 = vrsqrt.pop %v596
  %v615 = vmul.f32 %v596, %v614
  %vm616 = vcmp.eq.f32.partialorder %v596, inf
  %v617 = vsel %vm616, %v596, %v615
  %vm618 = vcmp.eq.f32.partialorder %v596, 0.0
  %v619 = vand.u32 %v596, 2147483648
  %v620 = vsel %vm618, %v619, %v617
  %v621 = vrsqrt.pop %v598
  %v622 = vmul.f32 %v598, %v621
  %vm623 = vcmp.eq.f32.partialorder %v598, inf
  %v624 = vsel %vm623, %v598, %v622
  %vm625 = vcmp.eq.f32.partialorder %v598, 0.0
  %v626 = vand.u32 %v598, 2147483648
  %v627 = vsel %vm625, %v626, %v624
  %v628 = vrsqrt.pop %v600
  %v629 = vmul.f32 %v600, %v628
  %vm630 = vcmp.eq.f32.partialorder %v600, inf
  %v631 = vsel %vm630, %v600, %v629
  %vm632 = vcmp.eq.f32.partialorder %v600, 0.0
  %v633 = vand.u32 %v600, 2147483648
  %v634 = vsel %vm632, %v633, %v631
  %v635 = vrsqrt.pop %v602
  %v636 = vmul.f32 %v602, %v635
  %vm637 = vcmp.eq.f32.partialorder %v602, inf
  %v638 = vsel %vm637, %v602, %v636
  %vm639 = vcmp.eq.f32.partialorder %v602, 0.0
  %v640 = vand.u32 %v602, 2147483648
  %v641 = vsel %vm639, %v640, %v638
  %v642 = vrsqrt.pop %v604
  %v643 = vmul.f32 %v604, %v642
  %vm644 = vcmp.eq.f32.partialorder %v604, inf
  %v645 = vsel %vm644, %v604, %v643
  %vm646 = vcmp.eq.f32.partialorder %v604, 0.0
  %v647 = vand.u32 %v604, 2147483648
  %v648 = vsel %vm646, %v647, %v645
  %v649 = vrsqrt.pop %v606
  %v650 = vmul.f32 %v606, %v649
  %vm651 = vcmp.eq.f32.partialorder %v606, inf
  %v652 = vsel %vm651, %v606, %v650
  %vm653 = vcmp.eq.f32.partialorder %v606, 0.0
  %v654 = vand.u32 %v606, 2147483648
  %v655 = vsel %vm653, %v654, %v652
  %v656 = vmax.f32 %v613, 1e-12
  %v657 = vmax.f32 %v620, 1e-12
  %v658 = vmax.f32 %v627, 1e-12
  %v659 = vmax.f32 %v634, 1e-12
  %v660 = vmax.f32 %v641, 1e-12
  %v661 = vmax.f32 %v648, 1e-12
  %v662 = vmax.f32 %v655, 1e-12
  %v663 = vrcp.pop %v656
  %v664 = vmul.f32 %v281, %v663
  %v665 = vrcp.pop %v657
  %v666 = vmul.f32 %v286, %v665
  %v667 = vrcp.pop %v658
  %v668 = vmul.f32 %v291, %v667
  %v669 = vrcp.pop %v659
  %v670 = vmul.f32 %v296, %v669
  %v671 = vrcp.pop %v660
  %v672 = vmul.f32 %v301, %v671
  %v673 = vrcp.pop %v661
  %v674 = vmul.f32 %v306, %v673
  %v675 = vrcp.pop %v662
  %v676 = vmul.f32 %v311, %v675
  %v677 = vmul.f32 %v664, 2.0
  %v678 = vmul.f32 %v666, 2.0
  %v679 = vmul.f32 %v668, 2.0
  %v680 = vmul.f32 %v670, 2.0
  %v681 = vmul.f32 %v672, 2.0
  %v682 = vmul.f32 %v674, 2.0
  %v683 = vmul.f32 %v676, 2.0
  %v684 = vadd.f32 %v48, %v677
  %v685 = vadd.f32 %v49, %v678
  %v686 = vadd.f32 %v50, %v679
  %v687 = vadd.f32 %v51, %v680
  %v688 = vadd.f32 %v52, %v681
  %v689 = vadd.f32 %v53, %v682
  %v690 = vadd.f32 %v54, %v683
  %691 = vst [vmem:[%s9] sm:$0xff] %v684
  %692 = vst [vmem:[%s9 + $0x8] sm:$0xff] %v685
  %693 = vst [vmem:[%s9 + $0x10] sm:$0xff] %v686
  %694 = vst [vmem:[%s9 + $0x18] sm:$0xff] %v687
  %695 = vst [vmem:[%s9 + $0x20] sm:$0xff] %v688
  %696 = vst [vmem:[%s9 + $0x28] sm:$0xff] %v689
  %697 = vst [vmem:[%s9 + $0x30] sm:$0xff] %v690
  %v698 = vmul.f32 %v584, %v584
  %v699 = vmul.f32 %v585, %v585
  %700 = vadd.xlane.f32.xlu0 %v698
  %v701 = vpop.xlane.xlu0 %700
  %702 = vadd.xlane.f32.xlu0 %v699
  %v703 = vpop.xlane.xlu0 %702
  %v704 = vrsqrt.pop %v701
  %v705 = vmul.f32 %v701, %v704
  %vm706 = vcmp.eq.f32.partialorder %v701, inf
  %v707 = vsel %vm706, %v701, %v705
  %vm708 = vcmp.eq.f32.partialorder %v701, 0.0
  %v709 = vand.u32 %v701, 2147483648
  %v710 = vsel %vm708, %v709, %v707
  %v711 = vrsqrt.pop %v703
  %v712 = vmul.f32 %v703, %v711
  %vm713 = vcmp.eq.f32.partialorder %v703, inf
  %v714 = vsel %vm713, %v703, %v712
  %vm715 = vcmp.eq.f32.partialorder %v703, 0.0
  %v716 = vand.u32 %v703, 2147483648
  %v717 = vsel %vm715, %v716, %v714
  %v718 = vmax.f32 %v710, 1e-12
  %v719 = vmax.f32 %v717, 1e-12
  %v720 = vrcp.pop %v718
  %v721 = vmul.f32 %v584, %v720
  %v722 = vrcp.pop %v719
  %v723 = vmul.f32 %v585, %v722
  %v724 = vmul.f32 %v721, 2.0
  %v725 = vmul.f32 %v723, 2.0
  %v726 = vadd.f32 %v314, %v724
  %v727 = vadd.f32 %v315, %v725
  %728 = vst [vmem:[%s10] sm:$0xff] %v726
  %729 = vst [vmem:[%s10 + $0x8] sm:$0xff] %v727
  // Predicated region
  $region38: #{kgin_forward.1} parent=0 // pred_check
    _
  $region39: #{kgin_forward.1} parent=0 // pred_check_branch
    %731 = sbr.rel (0) target = $region41
  $region40: #{kgin_forward.1} parent=0 // pred_region
    _
  $region41: #{kgin_forward.1} parent=0 // pred_fallthru
    _
  // Predicated region
  $region42: #{kgin_forward.1} parent=0 // pred_check
    _
  $region43: #{kgin_forward.1} parent=0 // pred_check_branch
    %733 = sbr.rel (0) target = $region45
  $region44: #{kgin_forward.1} parent=0 // pred_region
    _
  $region45: #{kgin_forward.1} parent=0 // pred_fallthru
    _
  // Predicated region
  $region46: #{kgin_forward.1} parent=0 // pred_check
    _
  $region47: #{kgin_forward.1} parent=0 // pred_check_branch
    %735 = sbr.rel (0) target = $region49
  $region48: #{kgin_forward.1} parent=0 // pred_region
    _
  $region49: #{kgin_forward.1} parent=0 // pred_fallthru
    _
  // Predicated region
  $region50: #{kgin_forward.1} parent=0 // pred_check
    _
  $region51: #{kgin_forward.1} parent=0 // pred_check_branch
    %737 = sbr.rel (0) target = $region53
  $region52: #{kgin_forward.1} parent=0 // pred_region
    _
  $region53: #{kgin_forward.1} parent=0 // pred_fallthru
    _

</llo_original>
